<compile_context>
chip_gen: v6e
topology: v6e:2x2x1
jax: 0.10.0
libtpu: 0.0.40
codegen_flags: <defaults>
</compile_context>

<pallas_src>
import jax
import jax.numpy as jnp
from jax import lax
from jax.experimental import pallas as pl
from jax.experimental.pallas import tpu as pltpu

LANE = 128                       # TPU vreg lane width
SUBLANE = 8                      # TPU vreg sublane count (f32)
_TILE_CAP = 1024                 # measured HBM-roofline sweet spot is ~512-1024 rows
_TILE_VMEM_BUDGET = 24 << 20     # conservative budget used to size the batch tile
_VMEM_LIMIT_BYTES = 32 << 20     # scoped VMEM limit passed to Mosaic (safe on v5e/v6e/v7x)


def _round_up(n, m):
    return ((n + m - 1) // m) * m


def _linear_kernel(x_ref, w_ref, b_ref, o_ref):
    # x_ref: [tile_b, D]; w_ref: [C, D] (PyTorch nn.Linear layout); b_ref: [1, C]
    # Contract x dim 1 with w dim 1 => x @ W^T, f32 accumulation on the MXU.
    acc = lax.dot_general(
        x_ref[...], w_ref[...],
        dimension_numbers=(((1,), (1,)), ((), ())),
        preferred_element_type=jnp.float32,
    )
    o_ref[...] = (acc + b_ref[...]).astype(o_ref.dtype)   # bias broadcast on the VPU


def _choose_tile(batch, d, c, x_itemsize):
    """Pick a sublane-aligned batch tile that fits the VMEM budget."""
    resident = 2 * (c * d * x_itemsize + c * 4)        # weight (double-buffered) + bias
    per_row = 2 * d * x_itemsize + 2 * c * 4           # x + out, both double-buffered
    fit = max(SUBLANE, (_TILE_VMEM_BUDGET - resident) // max(per_row, 1))
    tile = min(_TILE_CAP, (fit // SUBLANE) * SUBLANE, _round_up(batch, SUBLANE))
    tile = max(tile, SUBLANE)
    # Give the v7x megacore >= 2 batch blocks when the batch is big enough to matter.
    if batch >= 2 * SUBLANE and pl.cdiv(batch, tile) < 2:
        tile = _round_up(pl.cdiv(batch, 2), SUBLANE)
    return tile


class PallasLogisticRegression:
    """Inference-side equivalent of the PyTorch module's forward: self.linear(x)."""

    def __init__(self, weight, bias, *, use_bf16=False):
        # weight: [num_classes, input_size] (PyTorch nn.Linear layout); bias: [num_classes]
        self.num_classes, self.input_size = weight.shape
        self.use_bf16 = use_bf16
        param_dtype = jnp.bfloat16 if use_bf16 else jnp.float32
        # Hoisted parameter prep: done once here, not on every forward call.
        self.weight = jnp.asarray(weight, param_dtype)              # [C, D]
        self.bias = jnp.asarray(bias, jnp.float32).reshape(1, -1)   # [1, C]

    def __call__(self, x):
        return self.forward(x)

    def forward(self, x):
        if x.ndim > 2:                      # mirrors inputs.view(inputs.size(0), -1)
            x = x.reshape(x.shape[0], -1)
        if self.use_bf16:
            x = x.astype(jnp.bfloat16)
        batch, d = x.shape
        c = self.num_classes
        assert d == self.input_size

        tile = _choose_tile(batch, d, c, x.dtype.itemsize)
        grid = (pl.cdiv(batch, tile),)      # ragged last block handled by Pallas

        cost = pl.CostEstimate(
            flops=2 * batch * d * c,
            transcendentals=0,
            bytes_accessed=(batch * d * x.dtype.itemsize
                            + c * d * self.weight.dtype.itemsize
                            + c * 4 + batch * c * 4),
        )

        return pl.pallas_call(
            _linear_kernel,
            out_shape=jax.ShapeDtypeStruct((batch, c), jnp.float32),
            grid_spec=pltpu.PrefetchScalarGridSpec(
                num_scalar_prefetch=0,
                grid=grid,
                in_specs=[
                    pl.BlockSpec((tile, d), lambda i: (i, 0)),   # x: tiled over batch
                    pl.BlockSpec((c, d), lambda i: (0, 0)),      # weight: resident
                    pl.BlockSpec((1, c), lambda i: (0, 0)),      # bias: resident
                ],
                out_specs=pl.BlockSpec((tile, c), lambda i: (i, 0)),
            ),
            compiler_params=pltpu.CompilerParams(
                dimension_semantics=("parallel",),   # shard batch blocks across TCs (v7x)
                vmem_limit_bytes=_VMEM_LIMIT_BYTES,
            ),
            cost_estimate=cost,
        )(x, self.weight, self.bias)


if __name__ == "__main__":
    # Small shapes consistent with the module: flattened input of size 64, 10 classes.
    batch = 8
    input_size = 64
    num_classes = 10

    key = jax.random.PRNGKey(0)
    kx, kw, kb = jax.random.split(key, 3)

    # Deterministic parameter init mimicking nn.Linear default (uniform +-1/sqrt(fan_in)).
    bound = 1.0 / float(input_size) ** 0.5
    weight = jax.random.uniform(kw, (num_classes, input_size), jnp.float32,
                                minval=-bound, maxval=bound)
    bias = jax.random.uniform(kb, (num_classes,), jnp.float32,
                              minval=-bound, maxval=bound)
    x = jax.random.normal(kx, (batch, input_size), jnp.float32)

    model = PallasLogisticRegression(weight, bias)
    out = jax.block_until_ready(model(x))

    # Cross-check against plain-JAX reference (x @ W^T + b).
    ref = x @ weight.T + bias
    assert out.shape == (batch, num_classes)
    assert jnp.allclose(out, ref, atol=1e-5, rtol=1e-5)

    # Ragged-batch path (grid block bigger than the remaining rows; masked stores).
    x2 = jax.random.normal(kx, (13, input_size), jnp.float32)
    out2 = jax.block_until_ready(model(x2))
    assert out2.shape == (13, num_classes)
    assert jnp.allclose(out2, x2 @ weight.T + bias, atol=1e-5, rtol=1e-5)

    print("KERNEL_OK")
</pallas_src>

<mosaic_0001>
module attributes {stable_mosaic.version = 11 : i64} {
  func.func @_linear_kernel(%arg0: i32, %arg1: memref<8x64xf32, #tpu.memory_space<vmem>>, %arg2: memref<10x64xf32, #tpu.memory_space<vmem>>, %arg3: memref<1x10xf32, #tpu.memory_space<vmem>>, %arg4: memref<8x10xf32, #tpu.memory_space<vmem>>) attributes {dimension_semantics = [#tpu.dimension_semantics<parallel>], iteration_bounds = array<i64: 1>, scalar_prefetch = 0 : i64, scratch_operands = 0 : i64, tpu.core_type = #tpu.core_type<tc>, window_params = [{transform_indices = @transform_0, window_bounds = array<i64: 8, 64>}, {pipeline_mode = #tpu.pipeline_mode<synchronous>, transform_indices = @transform_1, window_bounds = array<i64: 10, 64>}, {pipeline_mode = #tpu.pipeline_mode<synchronous>, transform_indices = @transform_2, window_bounds = array<i64: 1, 10>}, {transform_indices = @transform_3, window_bounds = array<i64: 8, 10>}]} {
    %c0 = arith.constant 0 : index
    %c0_0 = arith.constant 0 : index
    %0 = vector.load %arg1[%c0, %c0_0] : memref<8x64xf32, #tpu.memory_space<vmem>>, vector<8x64xf32>
    %c0_1 = arith.constant 0 : index
    %c0_2 = arith.constant 0 : index
    %1 = vector.load %arg2[%c0_1, %c0_2] : memref<10x64xf32, #tpu.memory_space<vmem>>, vector<10x64xf32>
    %cst = arith.constant dense<0.000000e+00> : vector<8x10xf32>
    %2 = tpu.matmul %0, %1, %cst {dimension_numbers = #tpu.dot_dimension_numbers<[1], [1], [0], [0], [0, 0, 1, 0], [], []>} : vector<8x64xf32>, vector<10x64xf32>, vector<8x10xf32> -> vector<8x10xf32>
    %c0_3 = arith.constant 0 : index
    %c0_4 = arith.constant 0 : index
    %3 = vector.load %arg3[%c0_3, %c0_4] : memref<1x10xf32, #tpu.memory_space<vmem>>, vector<1x10xf32>
    %4 = vector.broadcast %3 : vector<1x10xf32> to vector<8x10xf32>
    %5 = arith.addf %2, %4 : vector<8x10xf32>
    %c0_5 = arith.constant 0 : index
    %c0_6 = arith.constant 0 : index
    %6 = vector.load %arg4[%c0_5, %c0_6] : memref<8x10xf32, #tpu.memory_space<vmem>>, vector<8x10xf32>
    tpu.vector_store %arg4[%c0_5, %c0_6], %5 {strides = array<i32>} : memref<8x10xf32, #tpu.memory_space<vmem>>, vector<8x10xf32>,
    return
  }
  func.func @transform_0(%arg0: i32) -> (i32, i32) {
    %c0_i32 = arith.constant 0 : i32
    %c0_i32_0 = arith.constant 0 : i32
    return %arg0, %c0_i32 : i32, i32
  }
  func.func @transform_1(%arg0: i32) -> (i32, i32) {
    %c0_i32 = arith.constant 0 : i32
    %c0_i32_0 = arith.constant 0 : i32
    %c0_i32_1 = arith.constant 0 : i32
    return %c0_i32, %c0_i32_0 : i32, i32
  }
  func.func @transform_2(%arg0: i32) -> (i32, i32) {
    %c0_i32 = arith.constant 0 : i32
    %c0_i32_0 = arith.constant 0 : i32
    %c0_i32_1 = arith.constant 0 : i32
    return %c0_i32, %c0_i32_0 : i32, i32
  }
  func.func @transform_3(%arg0: i32) -> (i32, i32) {
    %c0_i32 = arith.constant 0 : i32
    %c0_i32_0 = arith.constant 0 : i32
    return %arg0, %c0_i32 : i32, i32
  }
}

</mosaic_0001>

<llo_original>
// kernel: tpu_custom_call.1
$region0: #{tpu_custom_call.1}
  #allocation0 [shape = 'u32[]', space=smem, size = 0x4, offset = 0x4, fixed_abs, tag = 'smem constant byte address 0x4 - core index']
  #allocation1 [shape = 'u32[144,128]{1,0:T(1,128)}', space=vmem, size = 0x12000, scoped, tag = 'internal scratch']
  %s0 = inlined_call_operand.hbm [shape: f32[8,64], index: 0, kind: input, shape index: {}]
  %s1 = inlined_call_operand.hbm [shape: f32[10,64], index: 1, kind: input, shape index: {}]
  %s2 = inlined_call_operand.vmem [shape: f32[1,10], index: 2, kind: input, shape index: {}]
  %s3 = inlined_call_operand.hbm [shape: f32[8,10], index: 3, kind: output, shape index: {}]
  %s4 = sld [smem:[#allocation0]]
  $region30: #{tpu_custom_call.1} parent=0
    _
  %s6 = ssub.s32 1, %s4
  %s7 = scalar_select 0, %s6, %s4
  $region1: #{tpu_custom_call.1} parent=0
    #allocation2 [shape = 'u8[4096]{0}', space=vmem, size = 0x1000, scoped, tag = 'input window, operand 0, single buffered']
    #allocation3 [shape = 's32[1]{0}', space=sflag, size = 0x4, scoped, tag = 'scoped memory for tpu_custom_call.1']
    #allocation4 [shape = 's32[1]{0}', space=sflag, size = 0x4, scoped, tag = 'scoped memory for tpu_custom_call.1']
    #allocation5 [shape = 'u8[8192]{0}', space=vmem, size = 0x2000, scoped, tag = 'input window, operand 1, single buffered']
    #allocation6 [shape = 's32[1]{0}', space=sflag, size = 0x4, scoped, tag = 'scoped memory for tpu_custom_call.1']
    #allocation7 [shape = 'u8[4096]{0}', space=vmem, size = 0x1000, scoped, tag = 'output window, operand 0, single buffered']
    %8 = vsyncpa [#allocation3], 0
    %9 = vsyncpa [#allocation6], 0
    %10 = vsyncpa [#allocation4], 0
    // Predicated region
    $region2: #{tpu_custom_call.1} parent=1 // pred_check
      _
    $region3: #{tpu_custom_call.1} parent=1 // pred_check_branch
      %12 = sbr.rel (0) target = $region5
    $region4: #{tpu_custom_call.1} parent=1 // pred_region
      %s14 = ssub.s32 128, 128
      %15 = vsyncadd [#allocation3], %s14
      %s17 = sshll.u32 [#allocation2], 4
      %s18 = int_to_ptr.vmem [resolvable:$true] %s17
      %20 = dma.hbm_to_vmem [thread:$0]  %s0, 128, %s18, [#allocation3]
    $region5: #{tpu_custom_call.1} parent=1 // pred_fallthru
      _
    // Predicated region
    $region6: #{tpu_custom_call.1} parent=1 // pred_check
      _
    $region7: #{tpu_custom_call.1} parent=1 // pred_check_branch
      %22 = sbr.rel (0) target = $region9
    $region8: #{tpu_custom_call.1} parent=1 // pred_region
      %s24 = ssub.s32 256, 256
      %25 = vsyncadd [#allocation6], %s24
      %s26 = sshll.u32 [#allocation5], 4
      %s27 = int_to_ptr.vmem [resolvable:$true] %s26
      %32 = dma.hbm_to_vmem [thread:$0]  %s1, 256, %s27, [#allocation6], 128, 128, 8
    $region9: #{tpu_custom_call.1} parent=1 // pred_fallthru
      _
    // Predicated region
    $region10: #{tpu_custom_call.1} parent=1 // pred_check
      _
    $region11: #{tpu_custom_call.1} parent=1 // pred_check_branch
      %34 = sbr.rel (0) target = $region13
    $region12: #{tpu_custom_call.1} parent=1 // pred_region
      _
    $region13: #{tpu_custom_call.1} parent=1 // pred_fallthru
      _
    // Predicated region
    $region14: #{tpu_custom_call.1} parent=1 // pred_check
      _
    $region15: #{tpu_custom_call.1} parent=1 // pred_check_branch
      %36 = sbr.rel (0) target = $region17
    $region16: #{tpu_custom_call.1} parent=1 // pred_region
      %37 = dma.done [#allocation3], 128
    $region17: #{tpu_custom_call.1} parent=1 // pred_fallthru
      _
    // Predicated region
    $region18: #{tpu_custom_call.1} parent=1 // pred_check
      _
    $region19: #{tpu_custom_call.1} parent=1 // pred_check_branch
      %39 = sbr.rel (0) target = $region21
    $region20: #{tpu_custom_call.1} parent=1 // pred_region
      %40 = dma.done [#allocation6], 256
    $region21: #{tpu_custom_call.1} parent=1 // pred_fallthru
      _
    %v41 = vld [vmem:[#allocation2] sm:$0xff]
    %v42 = vld [vmem:[#allocation5] sm:$0xff]
    %v43 = vld [vmem:[#allocation5 + $0x8] sm:$0x3]
    %v44 = vld [vmem:[%s2] sm:$0x1]
    %v46 = vlaneseq
    %v47 = vshrl.u32 %v46, 7
    %v48 = vsub.s32 0, %v47
    %v49 = vrot.slane %v44, %v48
    %vm51 = vcmask 523264
    %v53 = vsel %vm51, %v41, 0
    %v56 = vsel %vm51, %v42, 0
    %v59 = vsel %vm51, %v43, 0
    %61 = vmatprep.subr.mxu0 0.0
    %62 = vmatpush1.xpose.msra.mxu0 0.0
    %63 = vmatprep.subr.mxu0 0.0
    %64 = vmatpush1.xpose.msra.mxu0 0.0
    %65 = vmatprep.subr.mxu0 0.0
    %66 = vmatpush1.xpose.msra.mxu0 0.0
    %67 = vmatprep.subr.mxu0 0.0
    %68 = vmatpush1.xpose.msra.mxu0 0.0
    %69 = vmatprep.subr.mxu0 0.0
    %70 = vmatpush1.xpose.msra.mxu0 0.0
    %71 = vmatprep.subr.mxu0 0.0
    %72 = vmatpush1.xpose.msra.mxu0 0.0
    %73 = vmatprep.subr.mxu0 0.0
    %74 = vmatpush1.xpose.msra.mxu0 0.0
    %75 = vmatprep.subr.mxu0 0.0
    %76 = vmatpush1.xpose.msra.mxu0 0.0
    %77 = vmatprep.subr.mxu0 0.0
    %78 = vmatpush1.xpose.msra.mxu0 0.0
    %79 = vmatprep.subr.mxu0 0.0
    %80 = vmatpush1.xpose.msra.mxu0 0.0
    %81 = vmatprep.subr.mxu0 0.0
    %82 = vmatpush1.xpose.msra.mxu0 0.0
    %83 = vmatprep.subr.mxu0 0.0
    %84 = vmatpush1.xpose.msra.mxu0 0.0
    %85 = vmatprep.subr.mxu0 0.0
    %86 = vmatpush1.xpose.msra.mxu0 0.0
    %87 = vmatprep.subr.mxu0 0.0
    %88 = vmatpush1.xpose.msra.mxu0 0.0
    %89 = vmatprep.subr.mxu0 0.0
    %90 = vmatpush1.xpose.msra.mxu0 %v59
    %91 = vmatprep.subr.mxu0 0.0
    %92 = vmatpush1.xpose.msra.mxu0 %v56
    %93 = vmatprep.subr.mxu0 0.0
    %94 = vmatpush2.xpose.msra.mxu0 0.0
    %95 = vmatprep.subr.mxu0 0.0
    %96 = vmatpush2.xpose.msra.mxu0 0.0
    %97 = vmatprep.subr.mxu0 0.0
    %98 = vmatpush2.xpose.msra.mxu0 0.0
    %99 = vmatprep.subr.mxu0 0.0
    %100 = vmatpush2.xpose.msra.mxu0 0.0
    %101 = vmatprep.subr.mxu0 0.0
    %102 = vmatpush2.xpose.msra.mxu0 0.0
    %103 = vmatprep.subr.mxu0 0.0
    %104 = vmatpush2.xpose.msra.mxu0 0.0
    %105 = vmatprep.subr.mxu0 0.0
    %106 = vmatpush2.xpose.msra.mxu0 0.0
    %107 = vmatprep.subr.mxu0 0.0
    %108 = vmatpush2.xpose.msra.mxu0 0.0
    %109 = vmatprep.subr.mxu0 0.0
    %110 = vmatpush2.xpose.msra.mxu0 0.0
    %111 = vmatprep.subr.mxu0 0.0
    %112 = vmatpush2.xpose.msra.mxu0 0.0
    %113 = vmatprep.subr.mxu0 0.0
    %114 = vmatpush2.xpose.msra.mxu0 0.0
    %115 = vmatprep.subr.mxu0 0.0
    %116 = vmatpush2.xpose.msra.mxu0 0.0
    %117 = vmatprep.subr.mxu0 0.0
    %118 = vmatpush2.xpose.msra.mxu0 0.0
    %119 = vmatprep.subr.mxu0 0.0
    %120 = vmatpush2.xpose.msra.mxu0 0.0
    %121 = vmatprep.subr.mxu0 0.0
    %122 = vmatpush2.xpose.msra.mxu0 0.0
    %123 = vmatprep.subr.mxu0 0.0
    %124 = vmatpush2.xpose.msra.mxu0 0.0
    %125 = vmatprep.mubr.f32.mxu0 0.0
    %126 = vmatmul.mubr.f32.gmra.mxu0 %v53
    %v127 = vpop.f32.mrf.mxu0
    %v128 = vadd.f32 %v49, %v127
    %v129 = vpop.f32.mrf.mxu0
    %130 = vdwg.mxu0
    %vm131 = vcmask 80896
    %132 = vst.msk [vmem:[#allocation7] sm:$0xff] %vm131, %v128
    // Predicated region
    $region22: #{tpu_custom_call.1} parent=1 // pred_check
      _
    $region23: #{tpu_custom_call.1} parent=1 // pred_check_branch
      %134 = sbr.rel (0) target = $region25
    $region24: #{tpu_custom_call.1} parent=1 // pred_region
      %s136 = ssub.s32 128, 128
      %137 = vsyncadd [#allocation4], %s136
      %s139 = sshll.u32 [#allocation7], 4
      %s140 = int_to_ptr.vmem [resolvable:$true] %s139
      %142 = dma.vmem_to_hbm [thread:$0]  %s140, 128, %s3, [#allocation4]
    $region25: #{tpu_custom_call.1} parent=1 // pred_fallthru
      _
    // Predicated region
    $region26: #{tpu_custom_call.1} parent=1 // pred_check
      _
    $region27: #{tpu_custom_call.1} parent=1 // pred_check_branch
      %144 = sbr.rel (0) target = $region29
    $region28: #{tpu_custom_call.1} parent=1 // pred_region
      %145 = dma.done [#allocation4], 128
    $region29: #{tpu_custom_call.1} parent=1 // pred_fallthru
      _
    %146 = vsyncpa [#allocation3], 1
    %147 = vsyncpa [#allocation6], 1
    %148 = vsyncpa [#allocation4], 1

</llo_original>
